<compile_context>
chip_gen: v7x
topology: tpu7x:2x2x1
jax: 0.10.0
libtpu: 0.0.40
codegen_flags: <defaults>
</compile_context>

<pallas_src>
import jax
import jax.numpy as jnp
from jax.experimental import pallas as pl
from jax.experimental.pallas import tpu as pltpu


# ----------------------------- fused Pallas kernel ---------------------------

def _critic_fused_kernel(p_ref, w_ref, out_ref, a2_ref):
    """Whole Critic forward for one (N,1,84,84) batch.

    p_ref  : (256, M) bf16  conv1 patches; rows = 4 conv2 taps x (8x8) patch,
                            columns = M = 5*N*5 positions ordered (w2, n, h2).
    w_ref  : (70, 258) bf16 packed parameters:
                              [ 0:64, 0:256]  block-diagonal conv1 weight
                              [ 0:64, 256  ]  conv1 bias tiled x4
                              [64:69, 0:64 ]  conv2 weight, taps concatenated
                              [64:69, 256  ]  conv2 bias
                              [64:69, 257  ]  Linear(5,1) weight
                              [69   , 256  ]  Linear(5,1) bias
    out_ref: (5, G) f32     softmax probs, G = N*5, layout (c2, n*5 + h2);
                            the wrapper reorders to PyTorch Flatten(0) order.
    a2_ref : (5, M) f32     scratch holding the conv2 output so the head can
                            read contiguous lane blocks as ref slices.
    """
    G = out_ref.shape[1]

    w1_bd = w_ref[0:64, 0:256]                                # (64,256) bf16
    b1 = w_ref[0:64, 256:257].astype(jnp.float32)             # (64,1)
    w2 = w_ref[64:69, 0:64]                                   # (5,64) bf16
    b2 = w_ref[64:69, 256:257].astype(jnp.float32)            # (5,1)
    lb = w_ref[69:70, 256:257].astype(jnp.float32)            # (1,1)

    # conv1 over all 4 conv2 taps: ONE bf16 matmul (block-diagonal weight).
    c1 = jnp.dot(w1_bd, p_ref[...],
                 preferred_element_type=jnp.float32)          # (64, M) f32
    a1 = jnp.tanh(c1 + b1)                                    # Tanh(), one slab

    # conv2 + tap-sum: ONE bf16 matmul, K = 64 (4 taps x 16 channels).
    a2_ref[...] = jnp.dot(w2, a1.astype(jnp.bfloat16),
                          preferred_element_type=jnp.float32) + b2   # (5, M)

    # Linear(5,1) over the width axis: columns are (w2, n, h2), so each w2 is a
    # contiguous lane block of width G -> 5 lin_w-scaled adds, no O(N^2) matmul.
    z = lb                                                    # fold lin_b in
    for j in range(5):
        lw_j = w_ref[64 + j:65 + j, 257:258].astype(jnp.float32)    # (1,1)
        z = z + a2_ref[:, j * G:(j + 1) * G] * lw_j                 # (5, G)

    # Flatten(0) + Softmax(dim=-1): one global softmax over all 5*G logits
    # (permutation-invariant, so the internal layout is irrelevant).
    m = jnp.max(jnp.max(z, axis=1, keepdims=True), axis=0, keepdims=True)
    e = jnp.exp(z - m)
    s = jnp.sum(jnp.sum(e, axis=1, keepdims=True), axis=0, keepdims=True)
    p = e / s                     # exact normalization (probs sum to 1)

    # relu on the softmax output (mathematical no-op, kept for fidelity).
    out_ref[...] = jnp.maximum(p, 0.0)


# ------------------------------- JAX wrapper ---------------------------------

def _conv1_patches(x_bf16, n):
    """Gather-free patch matrix for the conv1 outputs conv2 actually reads.

    x_bf16: (N, 84, 84) bf16.  For conv2 tap (kh, kw) the live conv1 output
    positions are (4*h2 + kh, 4*w2 + kw), h2,w2 in [0,5); their 8x8 conv1 input
    patches start every 16 pixels -> non-overlapping, so strided slices + one
    transpose per tap suffice (no gather, no double transpose).  Returns
    (256, 5*N*5) bf16: rows = 4 taps x 64 patch features, columns ordered
    (w2, n, h2) (width-major so the Linear(5,1) head reduces contiguous lane
    blocks inside the kernel).
    """
    blocks = []
    for kh in (0, 1):
        for kw in (0, 1):
            region = x_bf16[:, 4 * kh:4 * kh + 72, 4 * kw:4 * kw + 72]  # (N,72,72)
            r = region.reshape(n, 9, 8, 9, 8)[:, ::2, :, ::2, :]        # (n,h2,ph,w2,pw)
            r = r.transpose(2, 4, 3, 0, 1).reshape(64, 5 * n * 5)       # (feat,(w2,n,h2))
            blocks.append(r)
    return jnp.concatenate(blocks, axis=0)                              # (256, M)


def critic_forward(params, state_nchw):
    """state_nchw: (N, 1, 84, 84) f32  ->  (N*5*5,) f32 (softmax probs)."""
    n, c, h, w = state_nchw.shape
    assert c == 1 and h == 84 and w == 84, (
        "Critic's Linear(5,1) head requires the 84x84 Atari-style input.")
    m_pos = n * 25        # live conv2 output positions (w2, n, h2)
    gn = n * 5            # head output groups (n, h2)

    x = state_nchw[:, 0].astype(jnp.bfloat16)               # cast once, then slice
    patches = _conv1_patches(x, n)                          # (256, M) bf16

    # Pack every parameter into ONE bf16 blob (single parameter DMA).
    w1 = params["conv1_w"].reshape(16, 64)                  # (c_out, kh*kw)
    w2_cat = jnp.concatenate(
        [params["conv2_w"][:, :, kh, kw] for kh in (0, 1) for kw in (0, 1)],
        axis=1)                                             # (5, 64)
    blob = jnp.zeros((70, 258), jnp.float32)
    for b in range(4):                                      # block-diag conv1 weight
        blob = blob.at[16 * b:16 * (b + 1), 64 * b:64 * (b + 1)].set(w1)
    blob = blob.at[0:64, 256].set(jnp.tile(params["conv1_b"], 4))
    blob = blob.at[64:69, 0:64].set(w2_cat)
    blob = blob.at[64:69, 256].set(params["conv2_b"])
    blob = blob.at[64:69, 257].set(params["lin_w"][0])
    blob = blob.at[69, 256].set(params["lin_b"][0])
    blob = blob.astype(jnp.bfloat16)

    out = pl.pallas_call(
        _critic_fused_kernel,
        out_shape=jax.ShapeDtypeStruct((5, gn), jnp.float32),
        grid=(1,),
        in_specs=[
            pl.BlockSpec((256, m_pos), lambda i: (0, 0)),
            pl.BlockSpec((70, 258), lambda i: (0, 0)),
        ],
        out_specs=pl.BlockSpec((5, gn), lambda i: (0, 0)),
        scratch_shapes=[pltpu.VMEM((5, m_pos), jnp.float32)],
        compiler_params=pltpu.CompilerParams(
            dimension_semantics=("arbitrary",)),
    )(patches, blob)                                        # (5, G)

    # (c2, n, h2) -> PyTorch Flatten(0) order (n, c2, h2): 50-float reorder.
    return out.reshape(5, n, 5).transpose(1, 0, 2).reshape(-1)


# ----------------------- params + pure-JAX reference -------------------------

def init_params(key):
    ks = jax.random.split(key, 6)

    def u(k, shape, fan_in):
        bound = 1.0 / jnp.sqrt(jnp.float32(fan_in))
        return jax.random.uniform(k, shape, jnp.float32, -bound, bound)

    return {
        "conv1_w": u(ks[0], (16, 1, 8, 8), 1 * 8 * 8),   # (Cout, Cin, kh, kw)
        "conv1_b": u(ks[1], (16,), 1 * 8 * 8),
        "conv2_w": u(ks[2], (5, 16, 2, 2), 16 * 2 * 2),
        "conv2_b": u(ks[3], (5,), 16 * 2 * 2),
        "lin_w":   u(ks[4], (1, 5), 5),                  # (out, in)
        "lin_b":   u(ks[5], (1,), 5),
    }


def critic_reference(params, state_nchw):
    """Pure-JAX f32 reference of the PyTorch module (validation only)."""
    y = jax.lax.conv_general_dilated(
        state_nchw, params["conv1_w"], (4, 4), "VALID",
        dimension_numbers=("NCHW", "OIHW", "NCHW"))
    y = jnp.tanh(y + params["conv1_b"][None, :, None, None])
    y = jax.lax.conv_general_dilated(
        y, params["conv2_w"], (4, 4), "VALID",
        dimension_numbers=("NCHW", "OIHW", "NCHW"))
    y = y + params["conv2_b"][None, :, None, None]                 # (N,5,5,5)
    z = jnp.einsum("nchw,w->nch", y, params["lin_w"][0]) + params["lin_b"][0]
    p = jax.nn.softmax(z.reshape(-1), axis=-1)
    return jnp.maximum(p, 0.0)


if __name__ == "__main__":
    key = jax.random.PRNGKey(0)
    pkey, skey = jax.random.split(key)
    params = init_params(pkey)

    # Smallest canonical input satisfying the module's shape constraints
    # (the Linear(5,1) head needs the conv stack's output width to be 5).
    state = jax.random.normal(skey, (2, 1, 84, 84), dtype=jnp.float32)

    value = jax.jit(lambda s: critic_forward(params, s))(state)
    value = jax.block_until_ready(value)

    ref = critic_reference(params, state)

    assert value.shape == (2 * 5 * 5,)
    assert bool(jnp.all(value >= 0.0))
    assert bool(jnp.isclose(jnp.sum(value), 1.0, atol=5e-3))        # softmax
    max_err = float(jnp.max(jnp.abs(value - ref)))
    assert max_err < 2e-3, f"mismatch vs f32 reference: {max_err}"
    print("KERNEL_OK")
</pallas_src>

<mosaic_0001>
module attributes {stable_mosaic.version = 11 : i64} {
  func.func @_critic_fused_kernel(%arg0: i32, %arg1: memref<256x50xbf16, #tpu.memory_space<vmem>>, %arg2: memref<70x258xbf16, #tpu.memory_space<vmem>>, %arg3: memref<5x10xf32, #tpu.memory_space<vmem>>, %arg4: memref<5x50xf32, #tpu.memory_space<vmem>>) attributes {dimension_semantics = [#tpu.dimension_semantics<arbitrary>], iteration_bounds = array<i64: 1>, scalar_prefetch = 0 : i64, scratch_operands = 1 : i64, tpu.core_type = #tpu.core_type<tc>, window_params = [{pipeline_mode = #tpu.pipeline_mode<synchronous>, transform_indices = @transform_0, window_bounds = array<i64: 256, 50>}, {pipeline_mode = #tpu.pipeline_mode<synchronous>, transform_indices = @transform_1, window_bounds = array<i64: 70, 258>}, {pipeline_mode = #tpu.pipeline_mode<synchronous>, transform_indices = @transform_2, window_bounds = array<i64: 5, 10>}]} {
    %c0 = arith.constant 0 : index
    %c0_0 = arith.constant 0 : index
    %0 = vector.load %arg2[%c0, %c0_0] : memref<70x258xbf16, #tpu.memory_space<vmem>>, vector<64x256xbf16>
    %c0_1 = arith.constant 0 : index
    %c256 = arith.constant 256 : index
    %1 = vector.load %arg2[%c0_1, %c256] : memref<70x258xbf16, #tpu.memory_space<vmem>>, vector<64x1xbf16>
    %2 = arith.extf %1 : vector<64x1xbf16> to vector<64x1xf32>
    %c64 = arith.constant 64 : index
    %c0_2 = arith.constant 0 : index
    %3 = vector.load %arg2[%c64, %c0_2] : memref<70x258xbf16, #tpu.memory_space<vmem>>, vector<5x64xbf16>
    %c64_3 = arith.constant 64 : index
    %c256_4 = arith.constant 256 : index
    %4 = vector.load %arg2[%c64_3, %c256_4] : memref<70x258xbf16, #tpu.memory_space<vmem>>, vector<5x1xbf16>
    %5 = arith.extf %4 : vector<5x1xbf16> to vector<5x1xf32>
    %c69 = arith.constant 69 : index
    %c256_5 = arith.constant 256 : index
    %6 = vector.load %arg2[%c69, %c256_5] : memref<70x258xbf16, #tpu.memory_space<vmem>>, vector<1x1xbf16>
    %7 = arith.extf %6 : vector<1x1xbf16> to vector<1x1xf32>
    %c0_6 = arith.constant 0 : index
    %c0_7 = arith.constant 0 : index
    %8 = vector.load %arg1[%c0_6, %c0_7] : memref<256x50xbf16, #tpu.memory_space<vmem>>, vector<256x50xbf16>
    %cst = arith.constant dense<0.000000e+00> : vector<64x50xf32>
    %9 = tpu.matmul %0, %8, %cst {dimension_numbers = #tpu.dot_dimension_numbers<[1], [0], [0], [1], [0, 0, 1, 1], [], []>} : vector<64x256xbf16>, vector<256x50xbf16>, vector<64x50xf32> -> vector<64x50xf32>
    %10 = vector.broadcast %2 : vector<64x1xf32> to vector<64x50xf32>
    %11 = arith.addf %9, %10 : vector<64x50xf32>
    %12 = math.tanh %11 : vector<64x50xf32>
    %13 = arith.truncf %12 : vector<64x50xf32> to vector<64x50xbf16>
    %cst_8 = arith.constant dense<0.000000e+00> : vector<5x50xf32>
    %14 = tpu.matmul %3, %13, %cst_8 {dimension_numbers = #tpu.dot_dimension_numbers<[1], [0], [0], [1], [0, 0, 1, 1], [], []>} : vector<5x64xbf16>, vector<64x50xbf16>, vector<5x50xf32> -> vector<5x50xf32>
    %15 = vector.broadcast %5 : vector<5x1xf32> to vector<5x50xf32>
    %16 = arith.addf %14, %15 : vector<5x50xf32>
    %c0_9 = arith.constant 0 : index
    %c0_10 = arith.constant 0 : index
    %17 = vector.load %arg4[%c0_9, %c0_10] : memref<5x50xf32, #tpu.memory_space<vmem>>, vector<5x50xf32>
    tpu.vector_store %arg4[%c0_9, %c0_10], %16 {strides = array<i32>} : memref<5x50xf32, #tpu.memory_space<vmem>>, vector<5x50xf32>,
    %c64_11 = arith.constant 64 : index
    %c257 = arith.constant 257 : index
    %18 = vector.load %arg2[%c64_11, %c257] : memref<70x258xbf16, #tpu.memory_space<vmem>>, vector<1x1xbf16>
    %19 = arith.extf %18 : vector<1x1xbf16> to vector<1x1xf32>
    %c0_12 = arith.constant 0 : index
    %c0_13 = arith.constant 0 : index
    %20 = vector.load %arg4[%c0_12, %c0_13] : memref<5x50xf32, #tpu.memory_space<vmem>>, vector<5x10xf32>
    %21 = vector.broadcast %19 : vector<1x1xf32> to vector<5x10xf32>
    %22 = arith.mulf %20, %21 : vector<5x10xf32>
    %23 = vector.broadcast %7 : vector<1x1xf32> to vector<5x10xf32>
    %24 = arith.addf %23, %22 : vector<5x10xf32>
    %c65 = arith.constant 65 : index
    %c257_14 = arith.constant 257 : index
    %25 = vector.load %arg2[%c65, %c257_14] : memref<70x258xbf16, #tpu.memory_space<vmem>>, vector<1x1xbf16>
    %26 = arith.extf %25 : vector<1x1xbf16> to vector<1x1xf32>
    %c0_15 = arith.constant 0 : index
    %c10 = arith.constant 10 : index
    %27 = vector.load %arg4[%c0_15, %c10] : memref<5x50xf32, #tpu.memory_space<vmem>>, vector<5x10xf32>
    %28 = vector.broadcast %26 : vector<1x1xf32> to vector<5x10xf32>
    %29 = arith.mulf %27, %28 : vector<5x10xf32>
    %30 = arith.addf %24, %29 : vector<5x10xf32>
    %c66 = arith.constant 66 : index
    %c257_16 = arith.constant 257 : index
    %31 = vector.load %arg2[%c66, %c257_16] : memref<70x258xbf16, #tpu.memory_space<vmem>>, vector<1x1xbf16>
    %32 = arith.extf %31 : vector<1x1xbf16> to vector<1x1xf32>
    %c0_17 = arith.constant 0 : index
    %c20 = arith.constant 20 : index
    %33 = vector.load %arg4[%c0_17, %c20] : memref<5x50xf32, #tpu.memory_space<vmem>>, vector<5x10xf32>
    %34 = vector.broadcast %32 : vector<1x1xf32> to vector<5x10xf32>
    %35 = arith.mulf %33, %34 : vector<5x10xf32>
    %36 = arith.addf %30, %35 : vector<5x10xf32>
    %c67 = arith.constant 67 : index
    %c257_18 = arith.constant 257 : index
    %37 = vector.load %arg2[%c67, %c257_18] : memref<70x258xbf16, #tpu.memory_space<vmem>>, vector<1x1xbf16>
    %38 = arith.extf %37 : vector<1x1xbf16> to vector<1x1xf32>
    %c0_19 = arith.constant 0 : index
    %c30 = arith.constant 30 : index
    %39 = vector.load %arg4[%c0_19, %c30] : memref<5x50xf32, #tpu.memory_space<vmem>>, vector<5x10xf32>
    %40 = vector.broadcast %38 : vector<1x1xf32> to vector<5x10xf32>
    %41 = arith.mulf %39, %40 : vector<5x10xf32>
    %42 = arith.addf %36, %41 : vector<5x10xf32>
    %c68 = arith.constant 68 : index
    %c257_20 = arith.constant 257 : index
    %43 = vector.load %arg2[%c68, %c257_20] : memref<70x258xbf16, #tpu.memory_space<vmem>>, vector<1x1xbf16>
    %44 = arith.extf %43 : vector<1x1xbf16> to vector<1x1xf32>
    %c0_21 = arith.constant 0 : index
    %c40 = arith.constant 40 : index
    %45 = vector.load %arg4[%c0_21, %c40] : memref<5x50xf32, #tpu.memory_space<vmem>>, vector<5x10xf32>
    %46 = vector.broadcast %44 : vector<1x1xf32> to vector<5x10xf32>
    %47 = arith.mulf %45, %46 : vector<5x10xf32>
    %48 = arith.addf %42, %47 : vector<5x10xf32>
    %cst_22 = arith.constant dense<0xFF800000> : vector<5xf32>
    %49 = vector.multi_reduction <maximumf>, %48, %cst_22 [1] : vector<5x10xf32> to vector<5xf32>
    %50 = vector.shape_cast %49 : vector<5xf32> to vector<5x1xf32>
    %cst_23 = arith.constant dense<0xFF800000> : vector<1xf32>
    %51 = vector.multi_reduction <maximumf>, %50, %cst_23 [0] : vector<5x1xf32> to vector<1xf32>
    %52 = vector.shape_cast %51 : vector<1xf32> to vector<1x1xf32>
    %53 = vector.broadcast %52 : vector<1x1xf32> to vector<5x10xf32>
    %54 = arith.subf %48, %53 : vector<5x10xf32>
    %55 = math.exp %54 : vector<5x10xf32>
    %cst_24 = arith.constant dense<0.000000e+00> : vector<5xf32>
    %56 = vector.multi_reduction <add>, %55, %cst_24 [1] : vector<5x10xf32> to vector<5xf32>
    %57 = vector.shape_cast %56 : vector<5xf32> to vector<5x1xf32>
    %cst_25 = arith.constant dense<0.000000e+00> : vector<1xf32>
    %58 = vector.multi_reduction <add>, %57, %cst_25 [0] : vector<5x1xf32> to vector<1xf32>
    %59 = vector.shape_cast %58 : vector<1xf32> to vector<1x1xf32>
    %60 = vector.broadcast %59 : vector<1x1xf32> to vector<5x10xf32>
    %61 = arith.divf %55, %60 : vector<5x10xf32>
    %cst_26 = arith.constant 0.000000e+00 : f32
    %62 = vector.broadcast %cst_26 : f32 to vector<5x10xf32>
    %63 = arith.maximumf %61, %62 : vector<5x10xf32>
    %c0_27 = arith.constant 0 : index
    %c0_28 = arith.constant 0 : index
    %64 = vector.load %arg3[%c0_27, %c0_28] : memref<5x10xf32, #tpu.memory_space<vmem>>, vector<5x10xf32>
    tpu.vector_store %arg3[%c0_27, %c0_28], %63 {strides = array<i32>} : memref<5x10xf32, #tpu.memory_space<vmem>>, vector<5x10xf32>,
    return
  }
  func.func @transform_0(%arg0: i32) -> (i32, i32) {
    %c0_i32 = arith.constant 0 : i32
    %c0_i32_0 = arith.constant 0 : i32
    %c0_i32_1 = arith.constant 0 : i32
    return %c0_i32, %c0_i32_0 : i32, i32
  }
  func.func @transform_1(%arg0: i32) -> (i32, i32) {
    %c0_i32 = arith.constant 0 : i32
    %c0_i32_0 = arith.constant 0 : i32
    %c0_i32_1 = arith.constant 0 : i32
    return %c0_i32, %c0_i32_0 : i32, i32
  }
  func.func @transform_2(%arg0: i32) -> (i32, i32) {
    %c0_i32 = arith.constant 0 : i32
    %c0_i32_0 = arith.constant 0 : i32
    %c0_i32_1 = arith.constant 0 : i32
    return %c0_i32, %c0_i32_0 : i32, i32
  }
}

</mosaic_0001>

<llo_original>
// kernel: tile.6
$region0: #{tile.6}
  #allocation0 [shape = 's32[1]{0}', space=sflag, size = 0x4, scoped, tag = 'scoped memory for tile.6']
  %s0 = inlined_call_operand.vmem [shape: bf16[16], index: 0, kind: input, shape index: {}]
  %s1 = inlined_call_operand.vmem [shape: bf16[4,16], index: 1, kind: output, shape index: {}]
  // Predicated region
  $region2: #{tile.6} parent=0 // pred_check
    _
  $region3: #{tile.6} parent=0 // pred_check_branch
    %3 = sbr.rel (0) target = $region5
  $region4: #{tile.6} parent=0 // pred_region
    _
  $region5: #{tile.6} parent=0 // pred_fallthru
    _
  %v4 = vld [vmem:[%s0] ss:$0 sm:$0xff]
  %v5 = vunpack.i.l.bf16 %v4
  %v7 = vunpack.i.h.bf16 %v4
  %v9 = vpack.c.bf16 0.0, %v5
  %10 = vst [vmem:[%s1] sm:$0x3] %v9

// kernel: _lambda_.1
$region0: #{_lambda_.1}
  #allocation0 [shape = 'u32[]', space=smem, size = 0x4, offset = 0x4, fixed_abs, tag = 'smem constant byte address 0x4 - core index']
  #allocation1 [shape = 'u32[144,128]{1,0:T(1,128)}', space=vmem, size = 0x12000, scoped, tag = 'internal scratch']
  #allocation2 [shape = 'f32[5,50]{1,0:T(8,128)}', space=vmem, size = 0x1000, scoped, tag = 'scratch operand']
  %s0 = inlined_call_operand.vmem [shape: bf16[256,50], index: 0, kind: input, shape index: {}]
  %s1 = inlined_call_operand.vmem [shape: bf16[70,258], index: 1, kind: input, shape index: {}]
  %s2 = inlined_call_operand.vmem [shape: f32[5,10], index: 2, kind: output, shape index: {}]
  %s3 = sld [smem:[#allocation0]]
  $region18: #{_lambda_.1} parent=0
    _
  %s5 = ssub.s32 1, %s3
  %s6 = scalar_select 0, %s5, %s3
  // Predicated region
  $region2: #{_lambda_.1} parent=0 // pred_check
    _
  $region3: #{_lambda_.1} parent=0 // pred_check_branch
    %8 = sbr.rel (0) target = $region5
  $region4: #{_lambda_.1} parent=0 // pred_region
    _
  $region5: #{_lambda_.1} parent=0 // pred_fallthru
    _
  // Predicated region
  $region6: #{_lambda_.1} parent=0 // pred_check
    _
  $region7: #{_lambda_.1} parent=0 // pred_check_branch
    %10 = sbr.rel (0) target = $region9
  $region8: #{_lambda_.1} parent=0 // pred_region
    _
  $region9: #{_lambda_.1} parent=0 // pred_fallthru
    _
  %v12 = vld [vmem:[%s1] sm:$0xff]
  %v13 = vld [vmem:[%s1 + $0xc] sm:$0xff]
  %v14 = vld [vmem:[%s1 + $0x18] sm:$0xff]
  %v15 = vld [vmem:[%s1 + $0x24] sm:$0xff]
  %v16 = vld [vmem:[%s1 + $0x30] sm:$0xff]
  %v17 = vld [vmem:[%s1 + $0x3c] sm:$0xff]
  %v18 = vld [vmem:[%s1 + $0x48] sm:$0xff]
  %v19 = vld [vmem:[%s1 + $0x54] sm:$0xff]
  %v20 = vld [vmem:[%s1 + $0x8] sm:$0xf]
  %v21 = vld [vmem:[%s1 + $0x14] sm:$0xf]
  %v22 = vld [vmem:[%s1 + $0x20] sm:$0xf]
  %v23 = vld [vmem:[%s1 + $0x2c] sm:$0xf]
  %v24 = vld [vmem:[%s1 + $0x38] sm:$0xf]
  %v25 = vld [vmem:[%s1 + $0x44] sm:$0xf]
  %v26 = vld [vmem:[%s1 + $0x50] sm:$0xf]
  %v27 = vld [vmem:[%s1 + $0x5c] sm:$0xf]
  %v28 = vunpack.c.l.bf16 %v20
  %v29 = vunpack.c.l.bf16 %v21
  %v30 = vunpack.c.l.bf16 %v22
  %v31 = vunpack.c.l.bf16 %v23
  %v32 = vunpack.c.l.bf16 %v24
  %v33 = vunpack.c.l.bf16 %v25
  %v34 = vunpack.c.l.bf16 %v26
  %v35 = vunpack.c.l.bf16 %v27
  %v36 = vld [vmem:[%s1 + $0x60] sm:$0x7]
  %v37 = vld [vmem:[%s1 + $0x68] sm:$0x7]
  %v38 = vunpack.c.l.bf16 %v37
  %v39 = vld [vmem:[%s1 + $0x68] sm:$0x4]
  %v40 = vunpack.c.l.bf16 %v39
  %v41 = vld [vmem:[%s0] sm:$0xf]
  %v42 = vld [vmem:[%s0 + $0x4] sm:$0xf]
  %v43 = vld [vmem:[%s0 + $0x8] sm:$0xf]
  %v44 = vld [vmem:[%s0 + $0xc] sm:$0xf]
  %v45 = vld [vmem:[%s0 + $0x10] sm:$0xf]
  %v46 = vld [vmem:[%s0 + $0x14] sm:$0xf]
  %v47 = vld [vmem:[%s0 + $0x18] sm:$0xf]
  %v48 = vld [vmem:[%s0 + $0x1c] sm:$0xf]
  %v49 = vld [vmem:[%s0 + $0x20] sm:$0xf]
  %v50 = vld [vmem:[%s0 + $0x24] sm:$0xf]
  %v51 = vld [vmem:[%s0 + $0x28] sm:$0xf]
  %v52 = vld [vmem:[%s0 + $0x2c] sm:$0xf]
  %v53 = vld [vmem:[%s0 + $0x30] sm:$0xf]
  %v54 = vld [vmem:[%s0 + $0x34] sm:$0xf]
  %v55 = vld [vmem:[%s0 + $0x38] sm:$0xf]
  %v56 = vld [vmem:[%s0 + $0x3c] sm:$0xf]
  %v57 = vld [vmem:[%s0 + $0x40] sm:$0xf]
  %v58 = vld [vmem:[%s0 + $0x44] sm:$0xf]
  %v59 = vld [vmem:[%s0 + $0x48] sm:$0xf]
  %v60 = vld [vmem:[%s0 + $0x4c] sm:$0xf]
  %v61 = vld [vmem:[%s0 + $0x50] sm:$0xf]
  %v62 = vld [vmem:[%s0 + $0x54] sm:$0xf]
  %v63 = vld [vmem:[%s0 + $0x58] sm:$0xf]
  %v64 = vld [vmem:[%s0 + $0x5c] sm:$0xf]
  %v65 = vld [vmem:[%s0 + $0x60] sm:$0xf]
  %v66 = vld [vmem:[%s0 + $0x64] sm:$0xf]
  %v67 = vld [vmem:[%s0 + $0x68] sm:$0xf]
  %v68 = vld [vmem:[%s0 + $0x6c] sm:$0xf]
  %v69 = vld [vmem:[%s0 + $0x70] sm:$0xf]
  %v70 = vld [vmem:[%s0 + $0x74] sm:$0xf]
  %v71 = vld [vmem:[%s0 + $0x78] sm:$0xf]
  %v72 = vld [vmem:[%s0 + $0x7c] sm:$0xf]
  %74 = vset.pattern.permute.xlu0 0
  %75 = vperm.xlu0 %74, %v28
  %v76 = vpop.permute.xlu0 %75
  %79 = vset.pattern.permute.xlu0 0
  %80 = vperm.xlu0 %79, %v29
  %v81 = vpop.permute.xlu0 %80
  %84 = vset.pattern.permute.xlu0 0
  %85 = vperm.xlu0 %84, %v30
  %v86 = vpop.permute.xlu0 %85
  %89 = vset.pattern.permute.xlu0 0
  %90 = vperm.xlu0 %89, %v31
  %v91 = vpop.permute.xlu0 %90
  %94 = vset.pattern.permute.xlu0 0
  %95 = vperm.xlu0 %94, %v32
  %v96 = vpop.permute.xlu0 %95
  %99 = vset.pattern.permute.xlu0 0
  %100 = vperm.xlu0 %99, %v33
  %v101 = vpop.permute.xlu0 %100
  %104 = vset.pattern.permute.xlu0 0
  %105 = vperm.xlu0 %104, %v34
  %v106 = vpop.permute.xlu0 %105
  %109 = vset.pattern.permute.xlu0 0
  %110 = vperm.xlu0 %109, %v35
  %v111 = vpop.permute.xlu0 %110
  %v121 = vunpack.c.l.b16 %v12
  %v122 = vunpack.c.h.b16 %v12
  %v123 = vunpack.c.l.b16 %v13
  %v124 = vunpack.c.h.b16 %v13
  %v125 = vunpack.c.l.b16 %v14
  %v126 = vunpack.c.h.b16 %v14
  %v127 = vunpack.c.l.b16 %v15
  %v128 = vunpack.c.h.b16 %v15
  %v129 = vunpack.c.l.b16 %v16
  %v130 = vunpack.c.h.b16 %v16
  %v131 = vunpack.c.l.b16 %v17
  %v132 = vunpack.c.h.b16 %v17
  %v133 = vunpack.c.l.b16 %v18
  %v134 = vunpack.c.h.b16 %v18
  %v135 = vunpack.c.l.b16 %v19
  %v136 = vunpack.c.h.b16 %v19
  %v137 = vpack.c.b16 %v123, %v121
  %v138 = vpack.c.b16 %v124, %v122
  %v139 = vpack.c.b16 %v127, %v125
  %v140 = vpack.c.b16 %v128, %v126
  %v141 = vpack.c.b16 %v131, %v129
  %v142 = vpack.c.b16 %v132, %v130
  %v143 = vpack.c.b16 %v135, %v133
  %v144 = vpack.c.b16 %v136, %v134
  %v185 = vunpack.c.l.b16 %v41
  %v186 = vunpack.c.l.b16 %v42
  %v187 = vunpack.c.l.b16 %v43
  %v188 = vunpack.c.l.b16 %v44
  %v189 = vunpack.c.l.b16 %v45
  %v190 = vunpack.c.l.b16 %v46
  %v191 = vunpack.c.l.b16 %v47
  %v192 = vunpack.c.l.b16 %v48
  %v193 = vunpack.c.l.b16 %v49
  %v194 = vunpack.c.l.b16 %v50
  %v195 = vunpack.c.l.b16 %v51
  %v196 = vunpack.c.l.b16 %v52
  %v197 = vunpack.c.l.b16 %v53
  %v198 = vunpack.c.l.b16 %v54
  %v199 = vunpack.c.l.b16 %v55
  %v200 = vunpack.c.l.b16 %v56
  %v201 = vunpack.c.l.b16 %v57
  %v202 = vunpack.c.l.b16 %v58
  %v203 = vunpack.c.l.b16 %v59
  %v204 = vunpack.c.l.b16 %v60
  %v205 = vunpack.c.l.b16 %v61
  %v206 = vunpack.c.l.b16 %v62
  %v207 = vunpack.c.l.b16 %v63
  %v208 = vunpack.c.l.b16 %v64
  %v209 = vunpack.c.l.b16 %v65
  %v210 = vunpack.c.l.b16 %v66
  %v211 = vunpack.c.l.b16 %v67
  %v212 = vunpack.c.l.b16 %v68
  %v213 = vunpack.c.l.b16 %v69
  %v214 = vunpack.c.l.b16 %v70
  %v215 = vunpack.c.l.b16 %v71
  %v216 = vunpack.c.l.b16 %v72
  %v217 = vpack.c.b16 %v186, %v185
  %v218 = vpack.c.b16 %v188, %v187
  %v219 = vpack.c.b16 %v190, %v189
  %v220 = vpack.c.b16 %v192, %v191
  %v221 = vpack.c.b16 %v194, %v193
  %v222 = vpack.c.b16 %v196, %v195
  %v223 = vpack.c.b16 %v198, %v197
  %v224 = vpack.c.b16 %v200, %v199
  %v225 = vpack.c.b16 %v202, %v201
  %v226 = vpack.c.b16 %v204, %v203
  %v227 = vpack.c.b16 %v206, %v205
  %v228 = vpack.c.b16 %v208, %v207
  %v229 = vpack.c.b16 %v210, %v209
  %v230 = vpack.c.b16 %v212, %v211
  %v231 = vpack.c.b16 %v214, %v213
  %v232 = vpack.c.b16 %v216, %v215
  %249 = vmatprep.subr.bf16.mxu0 0
  %250 = vmatpush1.bf16.msra.mxu0 %v217
  %251 = vmatprep.subr.bf16.mxu0 0
  %252 = vmatpush1.bf16.msra.mxu0 %v218
  %253 = vmatprep.subr.bf16.mxu0 0
  %254 = vmatpush1.bf16.msra.mxu0 %v219
  %255 = vmatprep.subr.bf16.mxu0 0
  %256 = vmatpush1.bf16.msra.mxu0 %v220
  %257 = vmatprep.subr.bf16.mxu0 0
  %258 = vmatpush1.bf16.msra.mxu0 %v221
  %259 = vmatprep.subr.bf16.mxu0 0
  %260 = vmatpush1.bf16.msra.mxu0 %v222
  %261 = vmatprep.subr.bf16.mxu0 0
  %262 = vmatpush1.bf16.msra.mxu0 %v223
  %263 = vmatprep.subr.bf16.mxu0 0
  %264 = vmatpush1.bf16.msra.mxu0 %v224
  %265 = vmatprep.subr.bf16.mxu0 0
  %266 = vmatpush1.bf16.msra.mxu0 %v225
  %267 = vmatprep.subr.bf16.mxu0 0
  %268 = vmatpush1.bf16.msra.mxu0 %v226
  %269 = vmatprep.subr.bf16.mxu0 0
  %270 = vmatpush1.bf16.msra.mxu0 %v227
  %271 = vmatprep.subr.bf16.mxu0 0
  %272 = vmatpush1.bf16.msra.mxu0 %v228
  %273 = vmatprep.subr.bf16.mxu0 0
  %274 = vmatpush1.bf16.msra.mxu0 %v229
  %275 = vmatprep.subr.bf16.mxu0 0
  %276 = vmatpush1.bf16.msra.mxu0 %v230
  %277 = vmatprep.subr.bf16.mxu0 0
  %278 = vmatpush1.bf16.msra.mxu0 %v231
  %279 = vmatprep.subr.bf16.mxu0 0
  %280 = vmatpush1.bf16.msra.mxu0 %v232
  %281 = vmatprep.mubr.bf16.mxu0 %v138
  %282 = vmatmul.mubr.bf16.gmra.mrb[0].mxu0 %v137
  %v283 = vpop.f32.mrb[0].mxu0
  %v284 = vadd.f32 %v76, %v283
  %v285 = vpop.f32.mrb[0].mxu0
  %v286 = vpop.f32.mrb[0].mxu0
  %v287 = vadd.f32 %v81, %v286
  %v288 = vpop.f32.mrb[0].mxu0
  %289 = vmatprep.mubr.bf16.mxu0 %v140
  %290 = vmatmul.mubr.bf16.gmra.mrb[0].mxu0 %v139
  %v291 = vpop.f32.mrb[0].mxu0
  %v292 = vadd.f32 %v86, %v291
  %v293 = vpop.f32.mrb[0].mxu0
  %v294 = vpop.f32.mrb[0].mxu0
  %v295 = vadd.f32 %v91, %v294
  %v296 = vpop.f32.mrb[0].mxu0
  %297 = vmatprep.mubr.bf16.mxu0 %v142
  %298 = vmatmul.mubr.bf16.gmra.mrb[0].mxu0 %v141
  %v299 = vpop.f32.mrb[0].mxu0
  %v300 = vadd.f32 %v96, %v299
  %v301 = vpop.f32.mrb[0].mxu0
  %v302 = vpop.f32.mrb[0].mxu0
  %v303 = vadd.f32 %v101, %v302
  %v304 = vpop.f32.mrb[0].mxu0
  %305 = vmatprep.mubr.bf16.mxu0 %v144
  %306 = vmatmul.mubr.bf16.gmra.mrb[0].mxu0 %v143
  %v307 = vpop.f32.mrb[0].mxu0
  %v308 = vadd.f32 %v106, %v307
  %v309 = vpop.f32.mrb[0].mxu0
  %v310 = vpop.f32.mrb[0].mxu0
  %v311 = vadd.f32 %v111, %v310
  %v312 = vpop.f32.mrb[0].mxu0
  %313 = vdwg.mxu0
  %v314 = vtanh.pop %v284
  %v315 = vtanh.pop %v287
  %v316 = vtanh.pop %v292
  %v317 = vtanh.pop %v295
  %v318 = vtanh.pop %v300
  %v319 = vtanh.pop %v303
  %v320 = vtanh.pop %v308
  %v321 = vtanh.pop %v311
  %v322 = vpack.c.bf16 %v315, %v314
  %v323 = vpack.c.bf16 %v317, %v316
  %v324 = vpack.c.bf16 %v319, %v318
  %v325 = vpack.c.bf16 %v321, %v320
  %327 = vset.pattern.permute.xlu0 0
  %328 = vperm.xlu0 %327, %v38
  %v329 = vpop.permute.xlu0 %328
  %vm331 = vcmask 523264
  %v333 = vsel %vm331, %v36, 0
  %335 = vmatprep.subr.bf16.mxu0 0
  %336 = vmatpush1.bf16.msra.mxu0 %v322
  %337 = vmatprep.subr.bf16.mxu0 0
  %338 = vmatpush1.bf16.msra.mxu0 %v323
  %339 = vmatprep.subr.bf16.mxu0 0
  %340 = vmatpush1.bf16.msra.mxu0 %v324
  %341 = vmatprep.subr.bf16.mxu0 0
  %342 = vmatpush1.bf16.msra.mxu0 %v325
  %343 = vmatprep.subr.bf16.mxu0 0
  %344 = vmatpush1.bf16.msra.mxu0 0
  %345 = vmatprep.subr.bf16.mxu0 0
  %346 = vmatpush1.bf16.msra.mxu0 0
  %347 = vmatprep.subr.bf16.mxu0 0
  %348 = vmatpush1.bf16.msra.mxu0 0
  %349 = vmatprep.subr.bf16.mxu0 0
  %350 = vmatpush1.bf16.msra.mxu0 0
  %351 = vmatprep.subr.bf16.mxu0 0
  %352 = vmatpush1.bf16.msra.mxu0 0
  %353 = vmatprep.subr.bf16.mxu0 0
  %354 = vmatpush1.bf16.msra.mxu0 0
  %355 = vmatprep.subr.bf16.mxu0 0
  %356 = vmatpush1.bf16.msra.mxu0 0
  %357 = vmatprep.subr.bf16.mxu0 0
  %358 = vmatpush1.bf16.msra.mxu0 0
  %359 = vmatprep.subr.bf16.mxu0 0
  %360 = vmatpush1.bf16.msra.mxu0 0
  %361 = vmatprep.subr.bf16.mxu0 0
  %362 = vmatpush1.bf16.msra.mxu0 0
  %363 = vmatprep.subr.bf16.mxu0 0
  %364 = vmatpush1.bf16.msra.mxu0 0
  %365 = vmatprep.subr.bf16.mxu0 0
  %366 = vmatpush1.bf16.msra.mxu0 0
  %367 = vmatprep.mubr.bf16.mxu0 0
  %368 = vmatmul.mubr.bf16.gmra.mrb[0].mxu0 %v333
  %v369 = vpop.f32.mrb[0].mxu0
  %v370 = vadd.f32 %v329, %v369
  %v371 = vpop.f32.mrb[0].mxu0
  %v372 = vpop.f32.mrb[0].mxu0
  %v373 = vpop.f32.mrb[0].mxu0
  %374 = vdwg.mxu0
  %vm375 = vcmask 405504
  %376 = vst.msk [vmem:[#allocation2] sm:$0x1f] %vm375, %v370
  %v377 = vld [vmem:[%s1 + $0x68] sm:$0x1]
  %v378 = vunpack.c.l.bf16 %v377
  %v379 = vld [vmem:[#allocation2] sm:$0x1f]
  %381 = vrot.lane.b32.xlu0 %v378, 127
  %v382 = vpop.permute.xlu0 %381
  %s383 = vtos %v382
  %v384 = vstv %s383
  %v386 = vmul.f32 %v379, %v384
  %v388 = vrot.slane %v40, 5
  %s389 = vtos %v388
  %v390 = vstv %s389
  %v392 = vadd.f32 %v390, %v386
  %v393 = vrot.slane %v378, 1
  %394 = vrot.lane.b32.xlu0 %v393, 127
  %v395 = vpop.permute.xlu0 %394
  %s396 = vtos %v395
  %v397 = vstv %s396
  %v399 = vmul.f32 %v379, %v397
  %401 = vrot.lane.b32.xlu0 %v399, 118
  %v402 = vpop.permute.xlu0 %401
  %v404 = vadd.f32 %v392, %v402
  %v405 = vld [vmem:[%s1 + $0x68] sm:$0x2]
  %v406 = vunpack.c.l.bf16 %v405
  %v408 = vrot.slane %v406, 2
  %409 = vrot.lane.b32.xlu0 %v408, 127
  %v410 = vpop.permute.xlu0 %409
  %s411 = vtos %v410
  %v412 = vstv %s411
  %v414 = vmul.f32 %v379, %v412
  %416 = vrot.lane.b32.xlu0 %v414, 108
  %v417 = vpop.permute.xlu0 %416
  %v419 = vadd.f32 %v404, %v417
  %v420 = vrot.slane %v406, 3
  %421 = vrot.lane.b32.xlu0 %v420, 127
  %v422 = vpop.permute.xlu0 %421
  %s423 = vtos %v422
  %v424 = vstv %s423
  %v426 = vmul.f32 %v379, %v424
  %428 = vrot.lane.b32.xlu0 %v426, 98
  %v429 = vpop.permute.xlu0 %428
  %v431 = vadd.f32 %v419, %v429
  %v432 = vld [vmem:[%s1 + $0x68] sm:$0x4]
  %v433 = vunpack.c.l.bf16 %v432
  %v435 = vrot.slane %v433, 4
  %436 = vrot.lane.b32.xlu0 %v435, 127
  %v437 = vpop.permute.xlu0 %436
  %s438 = vtos %v437
  %v439 = vstv %s438
  %v441 = vmul.f32 %v379, %v439
  %443 = vrot.lane.b32.xlu0 %v441, 88
  %v444 = vpop.permute.xlu0 %443
  %v446 = vadd.f32 %v431, %v444
  %vm447 = vcmask 77824
  %v448 = vsel %vm447, %v446, -inf
  %449 = vmax.xlane.f32.xlu0 %v448
  %v450 = vpop.xlane.xlu0 %449
  %vm451 = vcmask 1044480
  %v452 = vsel %vm451, %v450, -inf
  %v453 = vrot.slane %v452, 4
  %v454 = vmax.f32 %v452, %v453
  %v455 = vrot.slane %v454, 2
  %v456 = vmax.f32 %v454, %v455
  %v457 = vrot.slane %v456, 1
  %v458 = vmax.f32 %v456, %v457
  %v459 = vsub.f32 %v446, %v458
  %v460 = vmul.f32 %v459, 1.442695
  %v461 = vpow.pop %v460
  %v462 = vsel %vm447, %v461, 0.0
  %463 = vadd.xlane.f32.xlu0 %v462
  %v464 = vpop.xlane.xlu0 %463
  %v465 = vsel %vm451, %v464, 0.0
  %v466 = vrot.slane %v465, 4
  %v467 = vadd.f32 %v465, %v466
  %v468 = vrot.slane %v467, 2
  %v469 = vadd.f32 %v467, %v468
  %v470 = vrot.slane %v469, 1
  %v471 = vadd.f32 %v469, %v470
  %v472 = vrcp.pop %v471
  %v473 = vmul.f32 %v461, %v472
  %v474 = vmax.f32 %v473, 0.0
  %475 = vst.msk [vmem:[%s2] sm:$0x1f] %vm447, %v474
  // Predicated region
  $region10: #{_lambda_.1} parent=0 // pred_check
    _
  $region11: #{_lambda_.1} parent=0 // pred_check_branch
    %477 = sbr.rel (0) target = $region13
  $region12: #{_lambda_.1} parent=0 // pred_region
    _
  $region13: #{_lambda_.1} parent=0 // pred_fallthru
    _
  // Predicated region
  $region14: #{_lambda_.1} parent=0 // pred_check
    _
  $region15: #{_lambda_.1} parent=0 // pred_check_branch
    %479 = sbr.rel (0) target = $region17
  $region16: #{_lambda_.1} parent=0 // pred_region
    _
  $region17: #{_lambda_.1} parent=0 // pred_fallthru
    _

</llo_original>
